<compile_context>
chip_gen: v6e
topology: v6e:2x2x1
jax: 0.10.0
libtpu: 0.0.40
codegen_flags: <defaults>
</compile_context>

<pallas_src>
import functools

import jax
import jax.numpy as jnp
from jax.experimental import pallas as pl
from jax.experimental.pallas import tpu as pltpu


def _round_up(x, m):
    return (x + m - 1) // m * m


def _gelu_exact_f32(h):
    """Exact (erf-based) GELU matching torch.nn.GELU() default.

    erf is evaluated with the Abramowitz & Stegun 7.1.26 rational/exp
    approximation (|err| <= 1.5e-7), which lowers with only exp + VPU ops.
    """
    z = h * 0.7071067811865476          # h / sqrt(2)
    az = jnp.abs(z)
    t = 1.0 / (1.0 + 0.3275911 * az)
    poly = t * (0.254829592
                + t * (-0.284496736
                       + t * (1.421413741
                              + t * (-1.453152027
                                     + t * 1.061405429))))
    erf_abs = 1.0 - poly * jnp.exp(-az * az)
    erf_z = jnp.where(z < 0.0, -erf_abs, erf_abs)
    return 0.5 * h * (1.0 + erf_z)


def _ffn_kernel(x_ref, w1_ref, b1_ref, w2_ref, b2_ref, o_ref, acc_ref):
    # Grid: (token tiles i, pf_dim tiles p).  p is the reduction axis of the
    # second matmul; GELU is elementwise over P so it can be applied per slab.
    p = pl.program_id(1)

    @pl.when(p == 0)
    def _():
        acc_ref[...] = jnp.zeros_like(acc_ref)

    # Linear 1 (one P-slab of columns): MXU in native dtype, f32 accumulate.
    h = jnp.dot(x_ref[...], w1_ref[...], preferred_element_type=jnp.float32)
    h = h + b1_ref[...].astype(jnp.float32)

    # Exact GELU in f32 (see _gelu_exact_f32).
    h = _gelu_exact_f32(h)

    # Dropout: identity (eval mode).

    # Linear 2: accumulate partial products over the P grid axis in f32.
    acc_ref[...] += jnp.dot(h.astype(w2_ref.dtype), w2_ref[...],
                            preferred_element_type=jnp.float32)

    @pl.when(p == pl.num_programs(1) - 1)
    def _():
        o_ref[...] = (acc_ref[...]
                      + b2_ref[...].astype(jnp.float32)).astype(o_ref.dtype)


def feed_forward(x, w1, b1, w2, b2, *, tile_m=256, tile_p=512):
    """x: [B, S, H] -> [B, S, H].  w1: [H, P], b1: [P], w2: [P, H], b2: [H]."""
    B, S, H = x.shape
    P = w1.shape[1]
    M = B * S

    # Tile sizes: clamp to (padded) problem size; keep sublane/lane alignment.
    tm = min(tile_m, _round_up(M, 8))          # sublane multiple of 8
    tp = min(tile_p, _round_up(P, 128))        # lane-dense multiple of 128
    Hp = _round_up(H, 128)
    Pp = _round_up(P, tp)
    Mp = _round_up(M, tm)

    # Zero-padding is numerically exact for this FFN: padded H rows of x/W1
    # contribute 0; padded P columns give GELU(0)=0 and hit zero rows of W2;
    # padded output rows/columns are sliced away.
    x2d = jnp.pad(x.reshape(M, H), ((0, Mp - M), (0, Hp - H)))
    w1p = jnp.pad(w1, ((0, Hp - H), (0, Pp - P)))
    b1p = jnp.pad(b1, (0, Pp - P)).reshape(1, Pp)
    w2p = jnp.pad(w2, ((0, Pp - P), (0, Hp - H)))
    b2p = jnp.pad(b2, (0, Hp - H)).reshape(1, Hp)

    grid = (Mp // tm, Pp // tp)

    itemsize = x.dtype.itemsize
    cost = pl.CostEstimate(
        flops=int(4 * Mp * Hp * Pp),
        transcendentals=int(Mp * Pp),
        bytes_accessed=int(itemsize * (Mp * Hp * 2 + Hp * Pp * 2 + Pp + Hp)),
    )

    out2d = pl.pallas_call(
        _ffn_kernel,
        out_shape=jax.ShapeDtypeStruct((Mp, Hp), x.dtype),
        grid_spec=pltpu.PrefetchScalarGridSpec(
            num_scalar_prefetch=0,
            grid=grid,
            in_specs=[
                pl.BlockSpec((tm, Hp), lambda i, p: (i, 0)),   # x token tile
                pl.BlockSpec((Hp, tp), lambda i, p: (0, p)),   # W1 P-slab
                pl.BlockSpec((1, tp),  lambda i, p: (0, p)),   # b1 P-slab
                pl.BlockSpec((tp, Hp), lambda i, p: (p, 0)),   # W2 P-slab
                pl.BlockSpec((1, Hp),  lambda i, p: (0, 0)),   # b2
            ],
            out_specs=pl.BlockSpec((tm, Hp), lambda i, p: (i, 0)),
            scratch_shapes=[pltpu.VMEM((tm, Hp), jnp.float32)],
        ),
        compiler_params=pltpu.CompilerParams(
            dimension_semantics=("parallel", "arbitrary"),
            vmem_limit_bytes=48 * 1024 * 1024,
        ),
        cost_estimate=cost,
    )(x2d, w1p, b1p, w2p, b2p)

    return out2d[:M, :H].reshape(B, S, H)


def init_params(key, hidden_dim, pf_dim, dtype=jnp.float32):
    # Deterministic init mimicking nn.Linear (uniform in +/- 1/sqrt(fan_in)).
    k1, k2, k3, k4 = jax.random.split(key, 4)
    lim1 = 1.0 / jnp.sqrt(hidden_dim)
    lim2 = 1.0 / jnp.sqrt(pf_dim)
    # Stored as [in, out] (transposed vs. PyTorch's [out, in]).
    w1 = jax.random.uniform(k1, (hidden_dim, pf_dim), dtype, -lim1, lim1)
    b1 = jax.random.uniform(k2, (pf_dim,), dtype, -lim1, lim1)
    w2 = jax.random.uniform(k3, (pf_dim, hidden_dim), dtype, -lim2, lim2)
    b2 = jax.random.uniform(k4, (hidden_dim,), dtype, -lim2, lim2)
    return w1, b1, w2, b2


if __name__ == "__main__":
    batch, seq, hidden_dim, pf_dim = 2, 8, 32, 64
    dropout_ratio = 0.1  # unused in eval mode

    key = jax.random.PRNGKey(0)
    kx, kp = jax.random.split(key)
    x = jax.random.normal(kx, (batch, seq, hidden_dim), dtype=jnp.float32)
    w1, b1, w2, b2 = init_params(kp, hidden_dim, pf_dim)

    ffn = jax.jit(functools.partial(feed_forward, tile_m=256, tile_p=512))
    out = ffn(x, w1, b1, w2, b2)
    jax.block_until_ready(out)

    # Reference check (pure JAX, highest-precision matmuls, exact GELU).
    hi = jax.lax.Precision.HIGHEST
    ref = jnp.dot(x, w1, precision=hi) + b1
    ref = jax.nn.gelu(ref, approximate=False)
    ref = jnp.dot(ref, w2, precision=hi) + b2
    assert out.shape == (batch, seq, hidden_dim)
    # Tolerance covers possible MXU bf16-pass vs f32 precision differences
    # between the Pallas matmul and the XLA reference matmul.
    assert jnp.allclose(out, ref, atol=5e-3, rtol=1e-2), float(
        jnp.max(jnp.abs(out - ref)))

    print("KERNEL_OK")
</pallas_src>

<mosaic_0001>
module attributes {stable_mosaic.version = 11 : i64} {
  func.func @_ffn_kernel(%arg0: i32, %arg1: i32, %arg2: memref<16x128xf32, #tpu.memory_space<vmem>>, %arg3: memref<128x128xf32, #tpu.memory_space<vmem>>, %arg4: memref<1x128xf32, #tpu.memory_space<vmem>>, %arg5: memref<128x128xf32, #tpu.memory_space<vmem>>, %arg6: memref<1x128xf32, #tpu.memory_space<vmem>>, %arg7: memref<16x128xf32, #tpu.memory_space<vmem>>, %arg8: memref<16x128xf32, #tpu.memory_space<vmem>>) attributes {dimension_semantics = [#tpu.dimension_semantics<parallel>, #tpu.dimension_semantics<arbitrary>], iteration_bounds = array<i64: 1, 1>, scalar_prefetch = 0 : i64, scratch_operands = 1 : i64, tpu.core_type = #tpu.core_type<tc>, window_params = [{transform_indices = @transform_0, window_bounds = array<i64: 16, 128>}, {transform_indices = @transform_1, window_bounds = array<i64: 128, 128>}, {transform_indices = @transform_2, window_bounds = array<i64: 1, 128>}, {transform_indices = @transform_3, window_bounds = array<i64: 128, 128>}, {pipeline_mode = #tpu.pipeline_mode<synchronous>, transform_indices = @transform_4, window_bounds = array<i64: 1, 128>}, {transform_indices = @transform_5, window_bounds = array<i64: 16, 128>}]} {
    %c0_i32 = arith.constant 0 : i32
    %0 = arith.cmpi eq, %arg1, %c0_i32 : i32
    %1 = arith.extui %0 : i1 to i32
    %c0_i32_0 = arith.constant 0 : i32
    %2 = arith.cmpi ne, %1, %c0_i32_0 : i32
    scf.if %2 {
      %cst_30 = arith.constant 0.000000e+00 : f32
      %57 = vector.broadcast %cst_30 : f32 to vector<16x128xf32>
      %c0_31 = arith.constant 0 : index
      %c0_32 = arith.constant 0 : index
      %58 = vector.load %arg8[%c0_31, %c0_32] : memref<16x128xf32, #tpu.memory_space<vmem>>, vector<16x128xf32>
      tpu.vector_store %arg8[%c0_31, %c0_32], %57 {strides = array<i32>} : memref<16x128xf32, #tpu.memory_space<vmem>>, vector<16x128xf32>,
    } else {
    }
    %c0 = arith.constant 0 : index
    %c0_1 = arith.constant 0 : index
    %3 = vector.load %arg2[%c0, %c0_1] : memref<16x128xf32, #tpu.memory_space<vmem>>, vector<16x128xf32>
    %c0_2 = arith.constant 0 : index
    %c0_3 = arith.constant 0 : index
    %4 = vector.load %arg3[%c0_2, %c0_3] : memref<128x128xf32, #tpu.memory_space<vmem>>, vector<128x128xf32>
    %cst = arith.constant dense<0.000000e+00> : vector<16x128xf32>
    %5 = tpu.matmul %3, %4, %cst {dimension_numbers = #tpu.dot_dimension_numbers<[1], [0], [0], [1], [0, 0, 1, 1], [], []>} : vector<16x128xf32>, vector<128x128xf32>, vector<16x128xf32> -> vector<16x128xf32>
    %c0_4 = arith.constant 0 : index
    %c0_5 = arith.constant 0 : index
    %6 = vector.load %arg4[%c0_4, %c0_5] : memref<1x128xf32, #tpu.memory_space<vmem>>, vector<1x128xf32>
    %7 = vector.broadcast %6 : vector<1x128xf32> to vector<16x128xf32>
    %8 = arith.addf %5, %7 : vector<16x128xf32>
    %cst_6 = arith.constant 0.707106769 : f32
    %9 = vector.broadcast %cst_6 : f32 to vector<16x128xf32>
    %10 = arith.mulf %8, %9 : vector<16x128xf32>
    %11 = math.absf %10 : vector<16x128xf32>
    %cst_7 = arith.constant 0.327591091 : f32
    %12 = vector.broadcast %cst_7 : f32 to vector<16x128xf32>
    %13 = arith.mulf %12, %11 : vector<16x128xf32>
    %cst_8 = arith.constant 1.000000e+00 : f32
    %14 = vector.broadcast %cst_8 : f32 to vector<16x128xf32>
    %15 = arith.addf %14, %13 : vector<16x128xf32>
    %cst_9 = arith.constant 1.000000e+00 : f32
    %16 = vector.broadcast %cst_9 : f32 to vector<16x128xf32>
    %17 = arith.divf %16, %15 : vector<16x128xf32>
    %cst_10 = arith.constant 1.06140542 : f32
    %18 = vector.broadcast %cst_10 : f32 to vector<16x128xf32>
    %19 = arith.mulf %17, %18 : vector<16x128xf32>
    %cst_11 = arith.constant -1.45315206 : f32
    %20 = vector.broadcast %cst_11 : f32 to vector<16x128xf32>
    %21 = arith.addf %20, %19 : vector<16x128xf32>
    %22 = arith.mulf %17, %21 : vector<16x128xf32>
    %cst_12 = arith.constant 1.42141378 : f32
    %23 = vector.broadcast %cst_12 : f32 to vector<16x128xf32>
    %24 = arith.addf %23, %22 : vector<16x128xf32>
    %25 = arith.mulf %17, %24 : vector<16x128xf32>
    %cst_13 = arith.constant -0.284496725 : f32
    %26 = vector.broadcast %cst_13 : f32 to vector<16x128xf32>
    %27 = arith.addf %26, %25 : vector<16x128xf32>
    %28 = arith.mulf %17, %27 : vector<16x128xf32>
    %cst_14 = arith.constant 0.254829586 : f32
    %29 = vector.broadcast %cst_14 : f32 to vector<16x128xf32>
    %30 = arith.addf %29, %28 : vector<16x128xf32>
    %31 = arith.mulf %17, %30 : vector<16x128xf32>
    %cst_15 = arith.constant 0.000000e+00 : f32
    %32 = vector.broadcast %cst_15 : f32 to vector<16x128xf32>
    %33 = arith.subf %32, %11 : vector<16x128xf32>
    %34 = arith.mulf %33, %11 : vector<16x128xf32>
    %35 = math.exp %34 : vector<16x128xf32>
    %36 = arith.mulf %31, %35 : vector<16x128xf32>
    %cst_16 = arith.constant 1.000000e+00 : f32
    %37 = vector.broadcast %cst_16 : f32 to vector<16x128xf32>
    %38 = arith.subf %37, %36 : vector<16x128xf32>
    %cst_17 = arith.constant 0.000000e+00 : f32
    %39 = vector.broadcast %cst_17 : f32 to vector<16x128xf32>
    %40 = arith.cmpf olt, %10, %39 : vector<16x128xf32>
    %cst_18 = arith.constant 0.000000e+00 : f32
    %41 = vector.broadcast %cst_18 : f32 to vector<16x128xf32>
    %42 = arith.subf %41, %38 : vector<16x128xf32>
    %43 = arith.select %40, %42, %38 : vector<16x128xi1>, vector<16x128xf32>
    %cst_19 = arith.constant 5.000000e-01 : f32
    %44 = vector.broadcast %cst_19 : f32 to vector<16x128xf32>
    %45 = arith.mulf %44, %8 : vector<16x128xf32>
    %cst_20 = arith.constant 1.000000e+00 : f32
    %46 = vector.broadcast %cst_20 : f32 to vector<16x128xf32>
    %47 = arith.addf %46, %43 : vector<16x128xf32>
    %48 = arith.mulf %45, %47 : vector<16x128xf32>
    %c0_21 = arith.constant 0 : index
    %c0_22 = arith.constant 0 : index
    %49 = vector.load %arg8[%c0_21, %c0_22] : memref<16x128xf32, #tpu.memory_space<vmem>>, vector<16x128xf32>
    %c0_23 = arith.constant 0 : index
    %c0_24 = arith.constant 0 : index
    %50 = vector.load %arg5[%c0_23, %c0_24] : memref<128x128xf32, #tpu.memory_space<vmem>>, vector<128x128xf32>
    %cst_25 = arith.constant dense<0.000000e+00> : vector<16x128xf32>
    %51 = tpu.matmul %48, %50, %cst_25 {dimension_numbers = #tpu.dot_dimension_numbers<[1], [0], [0], [1], [0, 0, 1, 1], [], []>} : vector<16x128xf32>, vector<128x128xf32>, vector<16x128xf32> -> vector<16x128xf32>
    %52 = arith.addf %49, %51 : vector<16x128xf32>
    %c0_26 = arith.constant 0 : index
    %c0_27 = arith.constant 0 : index
    %53 = vector.load %arg8[%c0_26, %c0_27] : memref<16x128xf32, #tpu.memory_space<vmem>>, vector<16x128xf32>
    tpu.vector_store %arg8[%c0_26, %c0_27], %52 {strides = array<i32>} : memref<16x128xf32, #tpu.memory_space<vmem>>, vector<16x128xf32>,
    %c0_i32_28 = arith.constant 0 : i32
    %54 = arith.cmpi eq, %arg1, %c0_i32_28 : i32
    %55 = arith.extui %54 : i1 to i32
    %c0_i32_29 = arith.constant 0 : i32
    %56 = arith.cmpi ne, %55, %c0_i32_29 : i32
    scf.if %56 {
      %c0_30 = arith.constant 0 : index
      %c0_31 = arith.constant 0 : index
      %57 = vector.load %arg8[%c0_30, %c0_31] : memref<16x128xf32, #tpu.memory_space<vmem>>, vector<16x128xf32>
      %c0_32 = arith.constant 0 : index
      %c0_33 = arith.constant 0 : index
      %58 = vector.load %arg6[%c0_32, %c0_33] : memref<1x128xf32, #tpu.memory_space<vmem>>, vector<1x128xf32>
      %59 = vector.broadcast %58 : vector<1x128xf32> to vector<16x128xf32>
      %60 = arith.addf %57, %59 : vector<16x128xf32>
      %c0_34 = arith.constant 0 : index
      %c0_35 = arith.constant 0 : index
      %61 = vector.load %arg7[%c0_34, %c0_35] : memref<16x128xf32, #tpu.memory_space<vmem>>, vector<16x128xf32>
      tpu.vector_store %arg7[%c0_34, %c0_35], %60 {strides = array<i32>} : memref<16x128xf32, #tpu.memory_space<vmem>>, vector<16x128xf32>,
    } else {
    }
    return
  }
  func.func @transform_0(%arg0: i32, %arg1: i32) -> (i32, i32) {
    %c0_i32 = arith.constant 0 : i32
    %c0_i32_0 = arith.constant 0 : i32
    return %arg0, %c0_i32 : i32, i32
  }
  func.func @transform_1(%arg0: i32, %arg1: i32) -> (i32, i32) {
    %c0_i32 = arith.constant 0 : i32
    %c0_i32_0 = arith.constant 0 : i32
    return %c0_i32, %arg1 : i32, i32
  }
  func.func @transform_2(%arg0: i32, %arg1: i32) -> (i32, i32) {
    %c0_i32 = arith.constant 0 : i32
    %c0_i32_0 = arith.constant 0 : i32
    return %c0_i32, %arg1 : i32, i32
  }
  func.func @transform_3(%arg0: i32, %arg1: i32) -> (i32, i32) {
    %c0_i32 = arith.constant 0 : i32
    %c0_i32_0 = arith.constant 0 : i32
    return %arg1, %c0_i32 : i32, i32
  }
  func.func @transform_4(%arg0: i32, %arg1: i32) -> (i32, i32) {
    %c0_i32 = arith.constant 0 : i32
    %c0_i32_0 = arith.constant 0 : i32
    %c0_i32_1 = arith.constant 0 : i32
    return %c0_i32, %c0_i32_0 : i32, i32
  }
  func.func @transform_5(%arg0: i32, %arg1: i32) -> (i32, i32) {
    %c0_i32 = arith.constant 0 : i32
    %c0_i32_0 = arith.constant 0 : i32
    return %arg0, %c0_i32 : i32, i32
  }
}

</mosaic_0001>

<llo_original>
// kernel: feed_forward.1
$region0: #{feed_forward.1}
  #allocation0 [shape = 'u32[]', space=smem, size = 0x4, offset = 0x4, fixed_abs, tag = 'smem constant byte address 0x4 - core index']
  #allocation1 [shape = 'u32[144,128]{1,0:T(1,128)}', space=vmem, size = 0x12000, scoped, tag = 'internal scratch']
  #allocation2 [shape = 'f32[16,128]{1,0:T(8,128)}', space=vmem, size = 0x2000, scoped, tag = 'scratch operand']
  %s0 = inlined_call_operand.vmem [shape: f32[16,128], index: 0, kind: input, shape index: {}]
  %s1 = inlined_call_operand.vmem [shape: f32[128,128], index: 1, kind: input, shape index: {}]
  %s2 = inlined_call_operand.vmem [shape: f32[1,128], index: 2, kind: input, shape index: {}]
  %s3 = inlined_call_operand.vmem [shape: f32[128,128], index: 3, kind: input, shape index: {}]
  %s4 = inlined_call_operand.vmem [shape: f32[1,128], index: 4, kind: input, shape index: {}]
  %s5 = inlined_call_operand.vmem [shape: f32[16,128], index: 5, kind: output, shape index: {}]
  %s6 = sld [smem:[#allocation0]]
  $region38: #{feed_forward.1} parent=0
    _
  %s8 = ssub.s32 1, %s6
  %s9 = scalar_select 0, %s8, %s6
  // Predicated region
  $region2: #{feed_forward.1} parent=0 // pred_check
    _
  $region3: #{feed_forward.1} parent=0 // pred_check_branch
    %11 = sbr.rel (0) target = $region5
  $region4: #{feed_forward.1} parent=0 // pred_region
    _
  $region5: #{feed_forward.1} parent=0 // pred_fallthru
    _
  // Predicated region
  $region6: #{feed_forward.1} parent=0 // pred_check
    _
  $region7: #{feed_forward.1} parent=0 // pred_check_branch
    %13 = sbr.rel (0) target = $region9
  $region8: #{feed_forward.1} parent=0 // pred_region
    _
  $region9: #{feed_forward.1} parent=0 // pred_fallthru
    _
  // Predicated region
  $region10: #{feed_forward.1} parent=0 // pred_check
    _
  $region11: #{feed_forward.1} parent=0 // pred_check_branch
    %15 = sbr.rel (0) target = $region13
  $region12: #{feed_forward.1} parent=0 // pred_region
    _
  $region13: #{feed_forward.1} parent=0 // pred_fallthru
    _
  // Predicated region
  $region14: #{feed_forward.1} parent=0 // pred_check
    _
  $region15: #{feed_forward.1} parent=0 // pred_check_branch
    %17 = sbr.rel (0) target = $region17
  $region16: #{feed_forward.1} parent=0 // pred_region
    _
  $region17: #{feed_forward.1} parent=0 // pred_fallthru
    _
  // Predicated region
  $region18: #{feed_forward.1} parent=0 // pred_check
    _
  $region19: #{feed_forward.1} parent=0 // pred_check_branch
    %19 = sbr.rel (0) target = $region21
  $region20: #{feed_forward.1} parent=0 // pred_region
    _
  $region21: #{feed_forward.1} parent=0 // pred_fallthru
    _
  %p20 = scmp.eq.s32.totalorder 0, 0
  // Predicated region
  $region22: #{feed_forward.1} parent=0 // pred_check
    %p21 = pneg %p20
  $region23: #{feed_forward.1} parent=0 // pred_check_branch
    %23 = sbr.rel (%p21) target = $region25
  $region24: #{feed_forward.1} parent=0 // pred_region
    %24 = vst [vmem:[#allocation2] sm:$0xff] 0.0
    %25 = vst [vmem:[#allocation2 + $0x8] sm:$0xff] 0.0
  $region25: #{feed_forward.1} parent=0 // pred_fallthru
    _
  %v26 = vld [vmem:[%s0] sm:$0xff]
  %v27 = vld [vmem:[%s0 + $0x8] sm:$0xff]
  %v28 = vld [vmem:[%s1] sm:$0xff]
  %v29 = vld [vmem:[%s1 + $0x8] sm:$0xff]
  %v30 = vld [vmem:[%s1 + $0x10] sm:$0xff]
  %v31 = vld [vmem:[%s1 + $0x18] sm:$0xff]
  %v32 = vld [vmem:[%s1 + $0x20] sm:$0xff]
  %v33 = vld [vmem:[%s1 + $0x28] sm:$0xff]
  %v34 = vld [vmem:[%s1 + $0x30] sm:$0xff]
  %v35 = vld [vmem:[%s1 + $0x38] sm:$0xff]
  %v36 = vld [vmem:[%s1 + $0x40] sm:$0xff]
  %v37 = vld [vmem:[%s1 + $0x48] sm:$0xff]
  %v38 = vld [vmem:[%s1 + $0x50] sm:$0xff]
  %v39 = vld [vmem:[%s1 + $0x58] sm:$0xff]
  %v40 = vld [vmem:[%s1 + $0x60] sm:$0xff]
  %v41 = vld [vmem:[%s1 + $0x68] sm:$0xff]
  %v42 = vld [vmem:[%s1 + $0x70] sm:$0xff]
  %v43 = vld [vmem:[%s1 + $0x78] sm:$0xff]
  %v44 = vld [vmem:[%s2] sm:$0x1]
  %v46 = vlaneseq
  %v47 = vshrl.u32 %v46, 7
  %v48 = vsub.s32 0, %v47
  %v49 = vrot.slane %v44, %v48
  %51 = vmatprep.subr.mxu0 0.0
  %52 = vmatpush1.msra.mxu0 %v43
  %53 = vmatprep.subr.mxu0 0.0
  %54 = vmatpush1.msra.mxu0 %v42
  %55 = vmatprep.subr.mxu0 0.0
  %56 = vmatpush1.msra.mxu0 %v41
  %57 = vmatprep.subr.mxu0 0.0
  %58 = vmatpush1.msra.mxu0 %v40
  %59 = vmatprep.subr.mxu0 0.0
  %60 = vmatpush1.msra.mxu0 %v39
  %61 = vmatprep.subr.mxu0 0.0
  %62 = vmatpush1.msra.mxu0 %v38
  %63 = vmatprep.subr.mxu0 0.0
  %64 = vmatpush1.msra.mxu0 %v37
  %65 = vmatprep.subr.mxu0 0.0
  %66 = vmatpush1.msra.mxu0 %v36
  %67 = vmatprep.subr.mxu0 0.0
  %68 = vmatpush1.msra.mxu0 %v35
  %69 = vmatprep.subr.mxu0 0.0
  %70 = vmatpush1.msra.mxu0 %v34
  %71 = vmatprep.subr.mxu0 0.0
  %72 = vmatpush1.msra.mxu0 %v33
  %73 = vmatprep.subr.mxu0 0.0
  %74 = vmatpush1.msra.mxu0 %v32
  %75 = vmatprep.subr.mxu0 0.0
  %76 = vmatpush1.msra.mxu0 %v31
  %77 = vmatprep.subr.mxu0 0.0
  %78 = vmatpush1.msra.mxu0 %v30
  %79 = vmatprep.subr.mxu0 0.0
  %80 = vmatpush1.msra.mxu0 %v29
  %81 = vmatprep.subr.mxu0 0.0
  %82 = vmatpush1.msra.mxu0 %v28
  %83 = vmatprep.subr.mxu0 0.0
  %84 = vmatpush2.msra.mxu0 0.0
  %85 = vmatprep.subr.mxu0 0.0
  %86 = vmatpush2.msra.mxu0 0.0
  %87 = vmatprep.subr.mxu0 0.0
  %88 = vmatpush2.msra.mxu0 0.0
  %89 = vmatprep.subr.mxu0 0.0
  %90 = vmatpush2.msra.mxu0 0.0
  %91 = vmatprep.subr.mxu0 0.0
  %92 = vmatpush2.msra.mxu0 0.0
  %93 = vmatprep.subr.mxu0 0.0
  %94 = vmatpush2.msra.mxu0 0.0
  %95 = vmatprep.subr.mxu0 0.0
  %96 = vmatpush2.msra.mxu0 0.0
  %97 = vmatprep.subr.mxu0 0.0
  %98 = vmatpush2.msra.mxu0 0.0
  %99 = vmatprep.subr.mxu0 0.0
  %100 = vmatpush2.msra.mxu0 0.0
  %101 = vmatprep.subr.mxu0 0.0
  %102 = vmatpush2.msra.mxu0 0.0
  %103 = vmatprep.subr.mxu0 0.0
  %104 = vmatpush2.msra.mxu0 0.0
  %105 = vmatprep.subr.mxu0 0.0
  %106 = vmatpush2.msra.mxu0 0.0
  %107 = vmatprep.subr.mxu0 0.0
  %108 = vmatpush2.msra.mxu0 0.0
  %109 = vmatprep.subr.mxu0 0.0
  %110 = vmatpush2.msra.mxu0 0.0
  %111 = vmatprep.subr.mxu0 0.0
  %112 = vmatpush2.msra.mxu0 0.0
  %113 = vmatprep.subr.mxu0 0.0
  %114 = vmatpush2.msra.mxu0 0.0
  %115 = vmatprep.mubr.f32.mxu0 0.0
  %116 = vmatmul.mubr.f32.gmra.mxu0 %v26
  %v117 = vpop.f32.mrf.mxu0
  %v118 = vadd.f32 %v49, %v117
  %v119 = vpop.f32.mrf.mxu0
  %120 = vmatprep.mubr.f32.mxu0 0.0
  %121 = vmatmul.mubr.f32.gmra.mxu0 %v27
  %v122 = vpop.f32.mrf.mxu0
  %v123 = vadd.f32 %v49, %v122
  %v124 = vpop.f32.mrf.mxu0
  %125 = vdwg.mxu0
  %v126 = vmul.f32 %v118, 0.70710677
  %v127 = vmul.f32 %v123, 0.70710677
  %v128 = vand.u32 2147483647, %v126
  %v129 = vand.u32 2147483647, %v127
  %v130 = vmul.f32 %v128, 0.3275911
  %v131 = vmul.f32 %v129, 0.3275911
  %v132 = vadd.f32 %v130, 1.0
  %v133 = vadd.f32 %v131, 1.0
  %v134 = vrcp.pop %v132
  %v135 = vmul.f32 1.0, %v134
  %v136 = vrcp.pop %v133
  %v137 = vmul.f32 1.0, %v136
  %v138 = vmul.f32 %v135, 1.0614054
  %v139 = vmul.f32 %v137, 1.0614054
  %v140 = vadd.f32 %v138, -1.4531521
  %v141 = vadd.f32 %v139, -1.4531521
  %v142 = vmul.f32 %v135, %v140
  %v143 = vmul.f32 %v137, %v141
  %v144 = vadd.f32 %v142, 1.4214138
  %v145 = vadd.f32 %v143, 1.4214138
  %v146 = vmul.f32 %v135, %v144
  %v147 = vmul.f32 %v137, %v145
  %v148 = vadd.f32 %v146, -0.28449672
  %v149 = vadd.f32 %v147, -0.28449672
  %v150 = vmul.f32 %v135, %v148
  %v151 = vmul.f32 %v137, %v149
  %v152 = vadd.f32 %v150, 0.2548296
  %v153 = vadd.f32 %v151, 0.2548296
  %v154 = vmul.f32 %v135, %v152
  %v155 = vmul.f32 %v137, %v153
  %v156 = vsub.f32 0.0, %v128
  %v157 = vsub.f32 0.0, %v129
  %v158 = vmul.f32 %v156, %v128
  %v159 = vmul.f32 %v157, %v129
  %v160 = vmul.f32 %v158, 1.442695
  %v161 = vpow.pop %v160
  %v162 = vmul.f32 %v159, 1.442695
  %v163 = vpow.pop %v162
  %v164 = vmul.f32 %v154, %v161
  %v165 = vmul.f32 %v155, %v163
  %v166 = vsub.f32 1.0, %v164
  %v167 = vsub.f32 1.0, %v165
  %vm168 = vcmp.lt.f32.partialorder %v126, 0.0
  %vm169 = vcmp.lt.f32.partialorder %v127, 0.0
  %v170 = vsub.f32 0.0, %v166
  %v171 = vsub.f32 0.0, %v167
  %v172 = vsel %vm168, %v170, %v166
  %v173 = vsel %vm169, %v171, %v167
  %v174 = vmul.f32 %v118, 0.5
  %v175 = vmul.f32 %v123, 0.5
  %v176 = vadd.f32 %v172, 1.0
  %v177 = vadd.f32 %v173, 1.0
  %v178 = vmul.f32 %v174, %v176
  %v179 = vmul.f32 %v175, %v177
  %v180 = vld [vmem:[#allocation2] sm:$0xff]
  %v181 = vld [vmem:[#allocation2 + $0x8] sm:$0xff]
  %v182 = vld [vmem:[%s3] sm:$0xff]
  %v183 = vld [vmem:[%s3 + $0x8] sm:$0xff]
  %v184 = vld [vmem:[%s3 + $0x10] sm:$0xff]
  %v185 = vld [vmem:[%s3 + $0x18] sm:$0xff]
  %v186 = vld [vmem:[%s3 + $0x20] sm:$0xff]
  %v187 = vld [vmem:[%s3 + $0x28] sm:$0xff]
  %v188 = vld [vmem:[%s3 + $0x30] sm:$0xff]
  %v189 = vld [vmem:[%s3 + $0x38] sm:$0xff]
  %v190 = vld [vmem:[%s3 + $0x40] sm:$0xff]
  %v191 = vld [vmem:[%s3 + $0x48] sm:$0xff]
  %v192 = vld [vmem:[%s3 + $0x50] sm:$0xff]
  %v193 = vld [vmem:[%s3 + $0x58] sm:$0xff]
  %v194 = vld [vmem:[%s3 + $0x60] sm:$0xff]
  %v195 = vld [vmem:[%s3 + $0x68] sm:$0xff]
  %v196 = vld [vmem:[%s3 + $0x70] sm:$0xff]
  %v197 = vld [vmem:[%s3 + $0x78] sm:$0xff]
  %198 = vmatprep.subr.mxu0 0.0
  %199 = vmatpush1.msra.mxu0 %v197
  %200 = vmatprep.subr.mxu0 0.0
  %201 = vmatpush1.msra.mxu0 %v196
  %202 = vmatprep.subr.mxu0 0.0
  %203 = vmatpush1.msra.mxu0 %v195
  %204 = vmatprep.subr.mxu0 0.0
  %205 = vmatpush1.msra.mxu0 %v194
  %206 = vmatprep.subr.mxu0 0.0
  %207 = vmatpush1.msra.mxu0 %v193
  %208 = vmatprep.subr.mxu0 0.0
  %209 = vmatpush1.msra.mxu0 %v192
  %210 = vmatprep.subr.mxu0 0.0
  %211 = vmatpush1.msra.mxu0 %v191
  %212 = vmatprep.subr.mxu0 0.0
  %213 = vmatpush1.msra.mxu0 %v190
  %214 = vmatprep.subr.mxu0 0.0
  %215 = vmatpush1.msra.mxu0 %v189
  %216 = vmatprep.subr.mxu0 0.0
  %217 = vmatpush1.msra.mxu0 %v188
  %218 = vmatprep.subr.mxu0 0.0
  %219 = vmatpush1.msra.mxu0 %v187
  %220 = vmatprep.subr.mxu0 0.0
  %221 = vmatpush1.msra.mxu0 %v186
  %222 = vmatprep.subr.mxu0 0.0
  %223 = vmatpush1.msra.mxu0 %v185
  %224 = vmatprep.subr.mxu0 0.0
  %225 = vmatpush1.msra.mxu0 %v184
  %226 = vmatprep.subr.mxu0 0.0
  %227 = vmatpush1.msra.mxu0 %v183
  %228 = vmatprep.subr.mxu0 0.0
  %229 = vmatpush1.msra.mxu0 %v182
  %230 = vmatprep.subr.mxu0 0.0
  %231 = vmatpush2.msra.mxu0 0.0
  %232 = vmatprep.subr.mxu0 0.0
  %233 = vmatpush2.msra.mxu0 0.0
  %234 = vmatprep.subr.mxu0 0.0
  %235 = vmatpush2.msra.mxu0 0.0
  %236 = vmatprep.subr.mxu0 0.0
  %237 = vmatpush2.msra.mxu0 0.0
  %238 = vmatprep.subr.mxu0 0.0
  %239 = vmatpush2.msra.mxu0 0.0
  %240 = vmatprep.subr.mxu0 0.0
  %241 = vmatpush2.msra.mxu0 0.0
  %242 = vmatprep.subr.mxu0 0.0
  %243 = vmatpush2.msra.mxu0 0.0
  %244 = vmatprep.subr.mxu0 0.0
  %245 = vmatpush2.msra.mxu0 0.0
  %246 = vmatprep.subr.mxu0 0.0
  %247 = vmatpush2.msra.mxu0 0.0
  %248 = vmatprep.subr.mxu0 0.0
  %249 = vmatpush2.msra.mxu0 0.0
  %250 = vmatprep.subr.mxu0 0.0
  %251 = vmatpush2.msra.mxu0 0.0
  %252 = vmatprep.subr.mxu0 0.0
  %253 = vmatpush2.msra.mxu0 0.0
  %254 = vmatprep.subr.mxu0 0.0
  %255 = vmatpush2.msra.mxu0 0.0
  %256 = vmatprep.subr.mxu0 0.0
  %257 = vmatpush2.msra.mxu0 0.0
  %258 = vmatprep.subr.mxu0 0.0
  %259 = vmatpush2.msra.mxu0 0.0
  %260 = vmatprep.subr.mxu0 0.0
  %261 = vmatpush2.msra.mxu0 0.0
  %262 = vmatprep.mubr.f32.mxu0 0.0
  %263 = vmatmul.mubr.f32.gmra.mxu0 %v178
  %v264 = vpop.f32.mrf.mxu0
  %v265 = vadd.f32 0.0, %v264
  %v266 = vpop.f32.mrf.mxu0
  %267 = vmatprep.mubr.f32.mxu0 0.0
  %268 = vmatmul.mubr.f32.gmra.mxu0 %v179
  %v269 = vpop.f32.mrf.mxu0
  %v270 = vadd.f32 0.0, %v269
  %v271 = vpop.f32.mrf.mxu0
  %272 = vdwg.mxu0
  %v273 = vadd.f32 %v180, %v265
  %v274 = vadd.f32 %v181, %v270
  %275 = vst [vmem:[#allocation2] sm:$0xff] %v273
  %276 = vst [vmem:[#allocation2 + $0x8] sm:$0xff] %v274
  // Predicated region
  $region26: #{feed_forward.1} parent=0 // pred_check
    %p277 = pneg %p20
  $region27: #{feed_forward.1} parent=0 // pred_check_branch
    %279 = sbr.rel (%p277) target = $region29
  $region28: #{feed_forward.1} parent=0 // pred_region
    %v280 = vld [vmem:[#allocation2] sm:$0xff]
    %v281 = vld [vmem:[#allocation2 + $0x8] sm:$0xff]
    %v282 = vld [vmem:[%s4] sm:$0x1]
    %v284 = vlaneseq
    %v285 = vshrl.u32 %v284, 7
    %v286 = vsub.s32 0, %v285
    %v287 = vrot.slane %v282, %v286
    %v289 = vadd.f32 %v280, %v287
    %v290 = vadd.f32 %v281, %v287
    %291 = vst [vmem:[%s5] sm:$0xff] %v289
    %292 = vst [vmem:[%s5 + $0x8] sm:$0xff] %v290
  $region29: #{feed_forward.1} parent=0 // pred_fallthru
    _
  // Predicated region
  $region30: #{feed_forward.1} parent=0 // pred_check
    _
  $region31: #{feed_forward.1} parent=0 // pred_check_branch
    %294 = sbr.rel (0) target = $region33
  $region32: #{feed_forward.1} parent=0 // pred_region
    _
  $region33: #{feed_forward.1} parent=0 // pred_fallthru
    _
  // Predicated region
  $region34: #{feed_forward.1} parent=0 // pred_check
    _
  $region35: #{feed_forward.1} parent=0 // pred_check_branch
    %296 = sbr.rel (0) target = $region37
  $region36: #{feed_forward.1} parent=0 // pred_region
    _
  $region37: #{feed_forward.1} parent=0 // pred_fallthru
    _

</llo_original>
